<compile_context>
chip_gen: v6e
topology: v6e:2x2x1
jax: 0.10.0
libtpu: 0.0.40
codegen_flags: <defaults>
</compile_context>

<pallas_src>
import math

import jax
import jax.numpy as jnp
from jax.experimental import pallas as pl
from jax.experimental.pallas import tpu as pltpu


_VMEM_LIMIT = 32 * 1024 * 1024


# ----------------------------- Pallas kernels ------------------------------

def _matmul_swish_kernel(x_ref, w_ref, b_ref, o_ref):
    # y = swish(x @ w + b); bf16 MXU operands, f32 accumulate + epilogue,
    # cast to the output dtype (bf16 activation storage) only at the store.
    acc = jnp.dot(x_ref[...], w_ref[...], preferred_element_type=jnp.float32)
    acc = acc + b_ref[...]
    o_ref[...] = (acc * jax.nn.sigmoid(acc)).astype(o_ref.dtype)


def _pick_tile(mw, row_bytes, target_bytes=2 << 20, min_steps=4):
    """Rows-per-block: ~target_bytes of in+out per block, at least `min_steps`
    grid steps when the array is big enough, multiple of 16 rows (bf16 pack)."""
    cap = max(16, target_bytes // max(row_bytes, 1))
    tm = min(cap, max(16, -(-mw // min_steps)))
    tm = max(16, (tm // 16) * 16)
    return int(tm)


def pallas_matmul_swish(x, w, b, out_dtype=jnp.bfloat16):
    """One backbone conv layer: lane-dense matmul + swish.

    x: (Mw, Kw)  activations (already in the "wide" layout, bf16)
    w: (Kw, Nw)  (block-diagonal) weight, bf16
    b: (1,  Nw)  bias, f32
    """
    Mw, Kw = x.shape
    Kw2, Nw = w.shape
    assert Kw == Kw2 and b.shape == (1, Nw)
    row_bytes = Kw * x.dtype.itemsize + Nw * jnp.dtype(out_dtype).itemsize
    tm = _pick_tile(Mw, row_bytes)
    m_pad = -(-Mw // tm) * tm
    if m_pad != Mw:
        x = jnp.pad(x, ((0, m_pad - Mw), (0, 0)))
    out = pl.pallas_call(
        _matmul_swish_kernel,
        out_shape=jax.ShapeDtypeStruct((m_pad, Nw), out_dtype),
        grid_spec=pltpu.PrefetchScalarGridSpec(
            num_scalar_prefetch=0,
            grid=(m_pad // tm,),
            in_specs=[
                pl.BlockSpec((tm, Kw), lambda i: (i, 0)),
                pl.BlockSpec((Kw, Nw), lambda i: (0, 0)),
                pl.BlockSpec((1, Nw), lambda i: (0, 0)),
            ],
            out_specs=pl.BlockSpec((tm, Nw), lambda i: (i, 0)),
        ),
        compiler_params=pltpu.CompilerParams(
            dimension_semantics=("parallel",),
            vmem_limit_bytes=_VMEM_LIMIT),
    )(x, w, b)
    return out[:Mw] if m_pad != Mw else out


def _make_dual_head_kernel(num_layers):
    """Fused classifier+regressor head: chained matmuls kept entirely in VMEM.

    All layers are in the lane-dense wide layout; the final layer applies
    sigmoid on the classifier lanes (mask==1) and identity on the rest.
    """
    def kernel(*refs):
        x_ref, mask_ref = refs[0], refs[1]
        o_ref = refs[-1]
        wbs = refs[2:-1]
        h = x_ref[...]                                        # (tm, 128) bf16
        for layer in range(num_layers):
            w = wbs[2 * layer][...]                           # bf16
            bias = wbs[2 * layer + 1][...]                    # (1, n) f32
            acc = jnp.dot(h, w, preferred_element_type=jnp.float32) + bias
            if layer + 1 < num_layers:
                h = (acc * jax.nn.sigmoid(acc)).astype(jnp.bfloat16)
            else:
                o_ref[...] = jnp.where(mask_ref[...] > 0.5,
                                       jax.nn.sigmoid(acc), acc)
    return kernel


def pallas_dual_head(flat_wide, head):
    """Run the fused cls+reg head once over all pyramid levels (wide layout)."""
    layers = head["layers_wide"]
    mask = head["mask"]
    Mw, Kw = flat_wide.shape
    n_out = layers[-1][0].shape[1]
    row_bytes = Kw * 2 + n_out * 4
    tm = _pick_tile(Mw, row_bytes)
    m_pad = -(-Mw // tm) * tm
    if m_pad != Mw:
        flat_wide = jnp.pad(flat_wide, ((0, m_pad - Mw), (0, 0)))

    in_specs = [pl.BlockSpec((tm, Kw), lambda i: (i, 0)),
                pl.BlockSpec((1, n_out), lambda i: (0, 0))]
    args = [flat_wide, mask]
    for (w, b) in layers:
        kw, nw = w.shape
        in_specs.append(pl.BlockSpec((kw, nw), lambda i: (0, 0)))
        in_specs.append(pl.BlockSpec((1, nw), lambda i: (0, 0)))
        args.append(w)
        args.append(b)

    out = pl.pallas_call(
        _make_dual_head_kernel(len(layers)),
        out_shape=jax.ShapeDtypeStruct((m_pad, n_out), jnp.float32),
        grid_spec=pltpu.PrefetchScalarGridSpec(
            num_scalar_prefetch=0,
            grid=(m_pad // tm,),
            in_specs=in_specs,
            out_specs=pl.BlockSpec((tm, n_out), lambda i: (i, 0)),
        ),
        compiler_params=pltpu.CompilerParams(
            dimension_semantics=("parallel",),
            vmem_limit_bytes=_VMEM_LIMIT),
    )(*args)
    return out[:Mw] if m_pad != Mw else out


# ------------------------------- glue / model ------------------------------

def _patchify2x2(x):
    # (B, H, W, C) -> (B*H/2*W/2, 4*C): im2col for a 2x2 / stride-2 conv.
    # TODO(synk): this reshape+transpose still runs as an XLA copy per layer
    # (on bf16 now); fusing it into the conv kernel needs in-VMEM relayouts
    # that Mosaic may not lower, so it stays on the wrapper side.
    B, H, W, C = x.shape
    x = x.reshape(B, H // 2, 2, W // 2, 2, C)
    x = x.transpose(0, 1, 3, 2, 4, 5)
    return x.reshape(B * (H // 2) * (W // 2), 4 * C)


def _init_linear(key, k, n, bias_init=None):
    kw, kb = jax.random.split(key)
    w = jax.random.normal(kw, (k, n), jnp.float32) * (1.0 / math.sqrt(k))
    if bias_init is None:
        b = jax.random.normal(kb, (n,), jnp.float32) * 0.01
    else:
        b = jnp.full((n,), bias_init, jnp.float32)
    return w, b


def _lane_group(n, max_g=16):
    """Smallest g such that g*n is a multiple of 128 (lane-dense), else 1."""
    g = 1
    while (n * g) % 128 != 0 and g < max_g:
        g += 1
    return g if (n * g) % 128 == 0 else 1


def _block_diag(w, g):
    """kron(I_g, w): block-diagonal replication used for the wide layout."""
    return jnp.kron(jnp.eye(g, dtype=w.dtype), w)


def init_efficientdet_params(key, num_classes, config):
    fpn = config["fpn_channels"]
    num_anchors = len(config["anchor_scales"]) * len(config["anchor_aspect_ratios"])
    repeat = config["regressor_classifier_num_repeat"]
    keys = iter(jax.random.split(key, 64))

    # TODO(synk): real backbone is EfficientNet MBConv blocks fused by a BiFPN;
    # here a simplified 2x2/stride-2 conv pyramid producing P3..P7 at fpn channels.
    backbone_chs = [(3, 16), (16, 32), (32, fpn),
                    (fpn, fpn), (fpn, fpn), (fpn, fpn), (fpn, fpn)]
    backbone = []
    for li, (cin, cout) in enumerate(backbone_chs):
        w, b = _init_linear(next(keys), 4 * cin, cout)
        if li == 0:
            # Fold ImageNet mean/std normalization (PreProcess) into conv0 (f32).
            mean4 = jnp.tile(jnp.array([0.485, 0.456, 0.406], jnp.float32), 4)
            std4 = jnp.tile(jnp.array([0.229, 0.224, 0.225], jnp.float32), 4)
            w = w / std4[:, None]
            b = b - mean4 @ w
        g = _lane_group(cout)
        backbone.append(dict(
            g=g,
            w=w.astype(jnp.bfloat16),
            b=b.reshape(1, cout),
            w_wide=_block_diag(w, g).astype(jnp.bfloat16),
            b_wide=jnp.tile(b, g).reshape(1, g * cout),
        ))

    # Head raw parameters (weights shared across pyramid levels).
    # TODO(synk): per-level other_norm_layer (BatchNorm) in Classifier/Regressor omitted.
    prior = -math.log((1.0 - 0.01) / 0.01)
    cls_repeat = [_init_linear(next(keys), fpn, fpn) for _ in range(repeat)]
    cls_final = _init_linear(next(keys), fpn, num_anchors * num_classes, bias_init=prior)
    reg_repeat = [_init_linear(next(keys), fpn, fpn) for _ in range(repeat)]
    reg_final = _init_linear(next(keys), fpn, num_anchors * 4)

    # Fold the eval-time even/odd coordinate swap into reg_final columns:
    # per-anchor 4-tuple (r0, r1, r2, r3) -> (r1, r0, r3, r2).
    perm = []
    for a in range(num_anchors):
        perm += [4 * a + 1, 4 * a + 0, 4 * a + 3, 4 * a + 2]
    perm = jnp.array(perm, jnp.int32)
    rfw, rfb = reg_final
    reg_final = (rfw[:, perm], rfb[perm])

    # Build the fused dual-head (cls || reg) narrow layer stack.
    n_cls = num_anchors * num_classes
    n_reg = num_anchors * 4
    zero = lambda r, c: jnp.zeros((r, c), jnp.float32)
    narrow_layers = []
    for r in range(repeat):
        cw, cb = cls_repeat[r]
        rw, rb = reg_repeat[r]
        if r == 0:
            w = jnp.concatenate([cw, rw], axis=1)                    # (fpn, 2*fpn)
        else:
            w = jnp.block([[cw, zero(fpn, fpn)], [zero(fpn, fpn), rw]])
        narrow_layers.append((w, jnp.concatenate([cb, rb], axis=0)))
    cfw, cfb = cls_final
    rfw, rfb = reg_final
    if repeat == 0:
        wf = jnp.concatenate([cfw, rfw], axis=1)
    else:
        wf = jnp.block([[cfw, zero(fpn, n_reg)], [zero(fpn, n_cls), rfw]])
    bf = jnp.concatenate([cfb, rfb], axis=0)
    n_total = n_cls + n_reg
    n_slab = ((n_total + 127) // 128) * 128        # lane-dense final slab width
    if n_slab != n_total:
        wf = jnp.pad(wf, ((0, 0), (0, n_slab - n_total)))
        bf = jnp.pad(bf, (0, n_slab - n_total))
    narrow_layers.append((wf, bf))

    # Widen the whole head by gh = lane group of the fpn input (=4 for fpn=32).
    gh = _lane_group(fpn)
    layers_wide = []
    for (w, b) in narrow_layers:
        layers_wide.append((_block_diag(w, gh).astype(jnp.bfloat16),
                            jnp.tile(b, gh).reshape(1, gh * w.shape[1])))
    mask = jnp.tile(
        jnp.concatenate([jnp.ones((n_cls,), jnp.float32),
                         jnp.zeros((n_slab - n_cls,), jnp.float32)]), gh
    ).reshape(1, gh * n_slab)

    head = dict(layers_wide=layers_wide, mask=mask, g=gh, n_slab=n_slab)

    return dict(backbone=backbone, head=head,
                n_cls=n_cls, n_reg=n_reg, num_anchors=num_anchors)


def _generate_anchors(image_size, base_scale, scales, ratios, levels=(3, 4, 5, 6, 7)):
    all_a = []
    for lvl in levels:
        stride = 2 ** lvl
        fs = image_size // stride
        yy, xx = jnp.meshgrid(jnp.arange(fs, dtype=jnp.float32),
                              jnp.arange(fs, dtype=jnp.float32), indexing="ij")
        cx = ((xx + 0.5) * stride).reshape(fs * fs, 1)
        cy = ((yy + 0.5) * stride).reshape(fs * fs, 1)
        whs = []
        for s in scales:
            for r in ratios:
                size = base_scale * stride * s
                whs.append((size * math.sqrt(r), size / math.sqrt(r)))
        whs = jnp.array(whs, jnp.float32)                  # (A, 2)
        x1 = cx - whs[:, 0] / 2.0
        y1 = cy - whs[:, 1] / 2.0
        x2 = cx + whs[:, 0] / 2.0
        y2 = cy + whs[:, 1] / 2.0
        a = jnp.stack([x1, y1, x2, y2], axis=-1).reshape(fs * fs * whs.shape[0], 4)
        all_a.append(a)
    return jnp.concatenate(all_a, axis=0)


def efficientdet_forward(params, image_list, num_classes, config,
                         targets=None, image_size=None,
                         score_thresh=None, nms_thresh=None):
    assert isinstance(image_list, list)
    if image_size:
        image_size = max(image_size, config["image_size"])
    else:
        image_size = config["image_size"]
    image_size = min(1920, image_size // 128 * 128)

    num_anchors = params["num_anchors"]
    n_cls, n_reg = params["n_cls"], params["n_reg"]
    head = params["head"]
    gh, n_slab = head["g"], head["n_slab"]

    # PreProcess mean/std normalization is folded into backbone[0]; the image is
    # cast to bf16 up front (the MXU operands are bf16 anyway), halving traffic.
    # TODO(synk): resize / pad-to-batch of variable-size images not implemented;
    # inputs are assumed to already be image_size x image_size.
    x = jnp.stack(image_list, axis=0)                        # (B, 3, H, W) NCHW like torch
    B, C, H, W = x.shape
    x = jnp.transpose(x, (0, 2, 3, 1)).astype(jnp.bfloat16)  # -> NHWC bf16

    # ---- Backbone -> pyramid features P3..P7 (strides 8..128) ----
    # TODO(synk): the four tiny deep layers (P4..P7 producers) still run as
    # separate pallas_calls; fusing them needs an in-VMEM 2x2 patchify
    # (relayout/transpose) that is not safely lowerable today.
    feats = []          # list of (narrow (rows, fpn) bf16, (B, Hl, Wl))
    h4 = x
    for idx, layer in enumerate(params["backbone"]):
        Bc, Hc, Wc, _ = h4.shape
        p = _patchify2x2(h4)                                 # (M, 4*Cin) bf16
        M, Kn = p.shape
        g = layer["g"]
        if M % g == 0:
            y_wide = pallas_matmul_swish(p.reshape(M // g, g * Kn),
                                         layer["w_wide"], layer["b_wide"])
            y = y_wide.reshape(M, -1)                        # free bitcast
        else:
            # Tiny deepest level (rows < g): narrow fallback, masked store is
            # irrelevant at this size.
            y = pallas_matmul_swish(p, layer["w"], layer["b"])
        cout = y.shape[1]
        h4 = y.reshape(Bc, Hc // 2, Wc // 2, cout)
        if idx >= 2:
            feats.append((y, (Bc, Hc // 2, Wc // 2)))

    # ---- Fused dual head over all levels concatenated row-wise ----
    level_rows = [f.shape[0] for f, _ in feats]
    flat = jnp.concatenate([f for f, _ in feats], axis=0)    # (M_total, fpn) bf16
    M_total, fpn = flat.shape
    m4 = -(-M_total // gh) * gh
    if m4 != M_total:
        flat = jnp.pad(flat, ((0, m4 - M_total), (0, 0)))
    flat_wide = flat.reshape(m4 // gh, gh * fpn)             # lane-dense (.., 128)
    head_wide = pallas_dual_head(flat_wide, head)            # (m4/gh, gh*n_slab) f32
    head_out = head_wide.reshape(m4, n_slab)                 # free bitcast

    cls_chunks, reg_chunks = [], []
    off = 0
    for (f, (Bc, Hc, Wc)), rows in zip(feats, level_rows):
        chunk = head_out[off:off + rows]
        off += rows
        cls_chunks.append(chunk[:, :n_cls].reshape(Bc, Hc * Wc * num_anchors, num_classes))
        reg_chunks.append(chunk[:, n_cls:n_cls + n_reg].reshape(Bc, Hc * Wc * num_anchors, 4))
    classifications = jnp.concatenate(cls_chunks, axis=1)
    # even/odd coordinate swap already folded into the regressor final weights
    regressions = jnp.concatenate(reg_chunks, axis=1)

    anchors = _generate_anchors(image_size, config["anchor_base_scale"],
                                config["anchor_scales"],
                                config["anchor_aspect_ratios"],
                                levels=(3, 4, 5, 6, 7))

    if targets is not None:
        # TODO(synk): FocalLoss training branch (anchor matching + focal / smooth-L1) not implemented.
        raise NotImplementedError("training branch not implemented")

    # TODO(synk): PostProcess (score-threshold filtering + per-class NMS) has no clean
    # Pallas/TPU equivalent (dynamic shapes); returning raw decoded head outputs.
    return {"classifications": classifications,
            "regressions": regressions,
            "anchors": anchors}


if __name__ == "__main__":
    config = dict(
        image_size=128,
        fpn_channels=32,
        anchor_scales=(1.0, 2.0 ** (1.0 / 3.0), 2.0 ** (2.0 / 3.0)),
        anchor_aspect_ratios=(0.5, 1.0, 2.0),
        anchor_base_scale=4,
        regressor_classifier_num_repeat=2,
        other_norm_layer=None,
        alpha=0.25,
        gamma=2.0,
    )
    num_classes = 4

    key = jax.random.PRNGKey(0)
    k_img, k_par = jax.random.split(key)
    k1, k2 = jax.random.split(k_img)
    # image_list: List[Tensor[C, H, W]] in [0, 1]
    image_list = [jax.random.uniform(k1, (3, 128, 128), jnp.float32),
                  jax.random.uniform(k2, (3, 128, 128), jnp.float32)]

    params = init_efficientdet_params(k_par, num_classes, config)
    out = efficientdet_forward(params, image_list, num_classes, config)
    out = jax.block_until_ready(out)

    n_total_anchors = sum(((128 // (2 ** l)) ** 2) * 9 for l in (3, 4, 5, 6, 7))
    assert out["classifications"].shape == (2, n_total_anchors, num_classes)
    assert out["regressions"].shape == (2, n_total_anchors, 4)
    assert out["anchors"].shape == (n_total_anchors, 4)
    assert bool(jnp.all(jnp.isfinite(out["classifications"])))
    assert bool(jnp.all(jnp.isfinite(out["regressions"])))
    assert bool(jnp.all((out["classifications"] >= 0.0) & (out["classifications"] <= 1.0)))
    print("KERNEL_OK")
</pallas_src>

<mosaic_0001>
module attributes {stable_mosaic.version = 11 : i64} {
  func.func @_matmul_swish_kernel(%arg0: i32, %arg1: memref<256x96xbf16, #tpu.memory_space<vmem>>, %arg2: memref<96x128xbf16, #tpu.memory_space<vmem>>, %arg3: memref<1x128xf32, #tpu.memory_space<vmem>>, %arg4: memref<256x128xbf16, #tpu.memory_space<vmem>>) attributes {dimension_semantics = [#tpu.dimension_semantics<parallel>], iteration_bounds = array<i64: 4>, scalar_prefetch = 0 : i64, scratch_operands = 0 : i64, tpu.core_type = #tpu.core_type<tc>, window_params = [{transform_indices = @transform_0, window_bounds = array<i64: 256, 96>}, {pipeline_mode = #tpu.pipeline_mode<synchronous>, transform_indices = @transform_1, window_bounds = array<i64: 96, 128>}, {pipeline_mode = #tpu.pipeline_mode<synchronous>, transform_indices = @transform_2, window_bounds = array<i64: 1, 128>}, {transform_indices = @transform_3, window_bounds = array<i64: 256, 128>}]} {
    %c0 = arith.constant 0 : index
    %c0_0 = arith.constant 0 : index
    %0 = vector.load %arg1[%c0, %c0_0] : memref<256x96xbf16, #tpu.memory_space<vmem>>, vector<256x96xbf16>
    %c0_1 = arith.constant 0 : index
    %c0_2 = arith.constant 0 : index
    %1 = vector.load %arg2[%c0_1, %c0_2] : memref<96x128xbf16, #tpu.memory_space<vmem>>, vector<96x128xbf16>
    %cst = arith.constant dense<0.000000e+00> : vector<256x128xf32>
    %2 = tpu.matmul %0, %1, %cst {dimension_numbers = #tpu.dot_dimension_numbers<[1], [0], [0], [1], [0, 0, 1, 1], [], []>} : vector<256x96xbf16>, vector<96x128xbf16>, vector<256x128xf32> -> vector<256x128xf32>
    %c0_3 = arith.constant 0 : index
    %c0_4 = arith.constant 0 : index
    %3 = vector.load %arg3[%c0_3, %c0_4] : memref<1x128xf32, #tpu.memory_space<vmem>>, vector<1x128xf32>
    %4 = vector.broadcast %3 : vector<1x128xf32> to vector<256x128xf32>
    %5 = arith.addf %2, %4 : vector<256x128xf32>
    %6 = arith.negf %5 : vector<256x128xf32>
    %7 = math.exp %6 : vector<256x128xf32>
    %cst_5 = arith.constant 1.000000e+00 : f32
    %8 = vector.broadcast %cst_5 : f32 to vector<256x128xf32>
    %9 = arith.addf %8, %7 : vector<256x128xf32>
    %10 = arith.divf %8, %9 : vector<256x128xf32>
    %11 = arith.mulf %5, %10 : vector<256x128xf32>
    %12 = arith.truncf %11 : vector<256x128xf32> to vector<256x128xbf16>
    %c0_6 = arith.constant 0 : index
    %c0_7 = arith.constant 0 : index
    %13 = vector.load %arg4[%c0_6, %c0_7] : memref<256x128xbf16, #tpu.memory_space<vmem>>, vector<256x128xbf16>
    tpu.vector_store %arg4[%c0_6, %c0_7], %12 {strides = array<i32>} : memref<256x128xbf16, #tpu.memory_space<vmem>>, vector<256x128xbf16>,
    return
  }
  func.func @transform_0(%arg0: i32) -> (i32, i32) {
    %c0_i32 = arith.constant 0 : i32
    %c0_i32_0 = arith.constant 0 : i32
    return %arg0, %c0_i32 : i32, i32
  }
  func.func @transform_1(%arg0: i32) -> (i32, i32) {
    %c0_i32 = arith.constant 0 : i32
    %c0_i32_0 = arith.constant 0 : i32
    %c0_i32_1 = arith.constant 0 : i32
    return %c0_i32, %c0_i32_0 : i32, i32
  }
  func.func @transform_2(%arg0: i32) -> (i32, i32) {
    %c0_i32 = arith.constant 0 : i32
    %c0_i32_0 = arith.constant 0 : i32
    %c0_i32_1 = arith.constant 0 : i32
    return %c0_i32, %c0_i32_0 : i32, i32
  }
  func.func @transform_3(%arg0: i32) -> (i32, i32) {
    %c0_i32 = arith.constant 0 : i32
    %c0_i32_0 = arith.constant 0 : i32
    return %arg0, %c0_i32 : i32, i32
  }
}

</mosaic_0001>

<llo_original>
// kernel: tpu_custom_call.1
$region0: #{tpu_custom_call.1}
  #allocation0 [shape = 'u32[]', space=smem, size = 0x4, offset = 0x4, fixed_abs, tag = 'smem constant byte address 0x4 - core index']
  #allocation1 [shape = 'u32[144,128]{1,0:T(1,128)}', space=vmem, size = 0x12000, scoped, tag = 'internal scratch']
  %s0 = inlined_call_operand.vmem [shape: bf16[1024,96], index: 0, kind: input, shape index: {}]
  %s1 = inlined_call_operand.vmem [shape: bf16[96,128], index: 1, kind: input, shape index: {}]
  %s2 = inlined_call_operand.vmem [shape: f32[1,128], index: 2, kind: input, shape index: {}]
  %s3 = inlined_call_operand.hbm [shape: bf16[1024,128], index: 3, kind: output, shape index: {}]
  %s4 = sld [smem:[#allocation0]]
  $region45: #{tpu_custom_call.1} parent=0
    _
  %s6 = ssub.s32 1, %s4
  %s7 = scalar_select 0, %s6, %s4
  $region1: #{tpu_custom_call.1} parent=0
    #allocation2 [shape = 'u8[131072]{0}', space=vmem, size = 0x20000, scoped, tag = 'output window, operand 0']
    #allocation3 [shape = 's32[2]{0}', space=sflag, size = 0x8, scoped, tag = 'scoped memory for tpu_custom_call.1']
    %8 = vsyncpa [#allocation3], 0
    %s9 = scalar_lea.sflag [#allocation3], 1
    %10 = vsyncpa %s9, 0
    loop: start=0, step=1, limit=6
    $region2: #{tpu_custom_call.1} parent=1 // loop_pre_header
      _
    $region3: #{tpu_custom_call.1} parent=1 // loop_header
      %s12 = sphi 0, %s16
      %p13 = scmp.ge.s32.totalorder %s12, 6
      %s22 = sphi 0, %s24
      %s25 = sphi 0, %s22
      %s26 = sphi 0, %s25
      %s42 = sphi 0, %s26
      %s46 = sphi 0, %s46
      %s48 = sphi 0, %s46
      %s49 = sphi 0, %s48
      %s63 = sphi 0, %s49
      %s67 = sphi 0, %s67
      %s69 = sphi 0, %s67
      %s70 = sphi 0, %s69
      %s84 = sphi 0, %s70
      %s90 = sphi 0, %s92
      %s93 = sphi 0, %s90
      %s94 = sphi 0, %s93
      %s110 = sphi 0, %s94
    $region4: #{tpu_custom_call.1} parent=1 // loop_header_branch
      %15 = sbr.rel (%p13) target = $region8
    $region5: #{tpu_custom_call.1} parent=1 // loop_body
      %s17 = ssub.s32 %s12, 1
      %s18 = ssub.s32 %s12, 2
      %s19 = sadd.s32 %s12, 1
      %s20 = ssub.s32 %s12, %s19
      %p21 = scmp.eq.s32.totalorder %s20, 0
      %s23 = sadd.s32 %s22, 1
      %s24 = scalar_select %p21, %s22, %s23
      %p27 = pneg %p21
      %p28 = scmp.eq.s32.totalorder %s12, 3
      %p29 = por %p27, %p28
      %p30 = scmp.ne.s32.totalorder %s22, %s25
      %p31 = scmp.eq.s32.totalorder %s12, 0
      %p32 = por %p30, %p31
      %p33 = scmp.ne.s32.totalorder %s22, %s25
      %p34 = scmp.eq.s32.totalorder %s17, 3
      %p35 = por %p33, %p34
      %p36 = scmp.ne.s32.totalorder %s25, %s26
      %p37 = scmp.eq.s32.totalorder %s17, 0
      %p38 = por %p36, %p37
      %p39 = scmp.ne.s32.totalorder %s25, %s26
      %p40 = scmp.eq.s32.totalorder %s18, 3
      %p41 = por %p39, %p40
      %p43 = scmp.ne.s32.totalorder %s26, %s42
      %p44 = scmp.eq.s32.totalorder %s18, 0
      %p45 = por %p43, %p44
      %s47 = sadd.s32 %s46, 1
      %p50 = scmp.eq.s32.totalorder %s12, 3
      %p51 = scmp.ne.s32.totalorder %s46, %s48
      %p52 = scmp.eq.s32.totalorder %s12, 0
      %p53 = por %p51, %p52
      %p54 = scmp.ne.s32.totalorder %s46, %s48
      %p55 = scmp.eq.s32.totalorder %s17, 3
      %p56 = por %p54, %p55
      %p57 = scmp.ne.s32.totalorder %s48, %s49
      %p58 = scmp.eq.s32.totalorder %s17, 0
      %p59 = por %p57, %p58
      %p60 = scmp.ne.s32.totalorder %s48, %s49
      %p61 = scmp.eq.s32.totalorder %s18, 3
      %p62 = por %p60, %p61
      %p64 = scmp.ne.s32.totalorder %s49, %s63
      %p65 = scmp.eq.s32.totalorder %s18, 0
      %p66 = por %p64, %p65
      %s68 = sadd.s32 %s67, 1
      %p71 = scmp.eq.s32.totalorder %s12, 3
      %p72 = scmp.ne.s32.totalorder %s67, %s69
      %p73 = scmp.eq.s32.totalorder %s12, 0
      %p74 = por %p72, %p73
      %p75 = scmp.ne.s32.totalorder %s67, %s69
      %p76 = scmp.eq.s32.totalorder %s17, 3
      %p77 = por %p75, %p76
      %p78 = scmp.ne.s32.totalorder %s69, %s70
      %p79 = scmp.eq.s32.totalorder %s17, 0
      %p80 = por %p78, %p79
      %p81 = scmp.ne.s32.totalorder %s69, %s70
      %p82 = scmp.eq.s32.totalorder %s18, 3
      %p83 = por %p81, %p82
      %p85 = scmp.ne.s32.totalorder %s70, %s84
      %p86 = scmp.eq.s32.totalorder %s18, 0
      %p87 = por %p85, %p86
      %s88 = ssub.s32 %s12, %s19
      %p89 = scmp.eq.s32.totalorder %s88, 0
      %s91 = sadd.s32 %s90, 1
      %s92 = scalar_select %p89, %s90, %s91
      %p95 = pneg %p89
      %p96 = scmp.eq.s32.totalorder %s12, 3
      %p97 = por %p95, %p96
      %p98 = scmp.ne.s32.totalorder %s90, %s93
      %p99 = scmp.eq.s32.totalorder %s12, 0
      %p100 = por %p98, %p99
      %p101 = scmp.ne.s32.totalorder %s90, %s93
      %p102 = scmp.eq.s32.totalorder %s17, 3
      %p103 = por %p101, %p102
      %p104 = scmp.ne.s32.totalorder %s93, %s94
      %p105 = scmp.eq.s32.totalorder %s17, 0
      %p106 = por %p104, %p105
      %p107 = scmp.ne.s32.totalorder %s93, %s94
      %p108 = scmp.eq.s32.totalorder %s18, 3
      %p109 = por %p107, %p108
      %p111 = scmp.ne.s32.totalorder %s94, %s110
      %p112 = scmp.eq.s32.totalorder %s18, 0
      %p113 = por %p111, %p112
      %p114 = scmp.le.s32.totalorder 1, %s12
      %p115 = scmp.lt.s32.totalorder %s12, 5
      %p116 = pnand %p114, %p115
      %p117 = pneg %p116
      // Predicated region
      $region9: #{tpu_custom_call.1} parent=5 // pred_check
        _
      $region10: #{tpu_custom_call.1} parent=5 // pred_check_branch
        %119 = sbr.rel (%p116) target = $region12
      $region11: #{tpu_custom_call.1} parent=5 // pred_region
        %s120 = ssub.s32 %s12, 1
        // Predicated region
        $region13: #{tpu_custom_call.1} parent=11 // pred_check
          %p121 = pneg %p59
        $region14: #{tpu_custom_call.1} parent=11 // pred_check_branch
          %123 = sbr.rel (%p121) target = $region16
        $region15: #{tpu_custom_call.1} parent=11 // pred_region
          _
        $region16: #{tpu_custom_call.1} parent=11 // pred_fallthru
          _
        // Predicated region
        $region17: #{tpu_custom_call.1} parent=11 // pred_check
          %p124 = pneg %p80
        $region18: #{tpu_custom_call.1} parent=11 // pred_check_branch
          %126 = sbr.rel (%p124) target = $region20
        $region19: #{tpu_custom_call.1} parent=11 // pred_region
          _
        $region20: #{tpu_custom_call.1} parent=11 // pred_fallthru
          _
      $region12: #{tpu_custom_call.1} parent=5 // pred_fallthru
        _
      %p127 = scmp.lt.s32.totalorder %s12, 4
      // Predicated region
      $region21: #{tpu_custom_call.1} parent=5 // pred_check
        %p128 = pneg %p127
      $region22: #{tpu_custom_call.1} parent=5 // pred_check_branch
        %130 = sbr.rel (%p128) target = $region24
      $region23: #{tpu_custom_call.1} parent=5 // pred_region
        // Predicated region
        $region25: #{tpu_custom_call.1} parent=23 // pred_check
          %p131 = pneg %p32
        $region26: #{tpu_custom_call.1} parent=23 // pred_check_branch
          %133 = sbr.rel (%p131) target = $region28
        $region27: #{tpu_custom_call.1} parent=23 // pred_region
          %s134 = smul.u32 32, %s12
          %p135 = scmp.lt.s32.totalorder %s134, 127
          %s136 = scalar_select %p135, %s134, 127
          %s137 = smul.addr %s136, 4
          %s138 = scalar_lea.vmem %s0, %s137
          %s139 = smul.u32 32, %s12
        $region28: #{tpu_custom_call.1} parent=23 // pred_fallthru
          _
      $region24: #{tpu_custom_call.1} parent=5 // pred_fallthru
        _
      %p140 = scmp.le.s32.totalorder 1, %s12
      %p141 = scmp.lt.s32.totalorder %s12, 5
      %p142 = pnand %p140, %p141
      %p143 = pneg %p142
      // Predicated region
      $region29: #{tpu_custom_call.1} parent=5 // pred_check
        _
      $region30: #{tpu_custom_call.1} parent=5 // pred_check_branch
        %145 = sbr.rel (%p142) target = $region32
      $region31: #{tpu_custom_call.1} parent=5 // pred_region
        %s146 = ssub.s32 %s12, 1
        %s147 = smul.u32 32, %s17
        %p148 = scmp.lt.s32.totalorder %s147, 127
        %s149 = scalar_select %p148, %s147, 127
        %s150 = smul.addr %s149, 4
        %s151 = scalar_lea.vmem %s0, %s150
        %p152 = pneg %p38
        %p153 = pneg %p35
        %p154 = pneg %p59
        %p155 = pneg %p56
        %p156 = pneg %p80
        %p157 = pneg %p77
        %p158 = pneg %p106
        %p159 = pneg %p103
        %s160 = sand.u32 %s93, 1
        %s161 = scalar_lea.sflag [#allocation3], %s160
        %s162 = sand.u32 %s93, 1
        %s163 = smul.addr %s162, 128
        %s164 = scalar_lea.vmem [#allocation2], %s163
        %s165 = smul.u32 32, %s17
        %p166 = scmp.lt.s32.totalorder %s165, 127
        %s167 = scalar_select %p166, %s165, 127
        %s168 = smul.addr %s167, 4
        %s169 = scalar_lea.vmem %s0, %s168
        %s170 = smul.u32 32, %s17
        %s171 = smul.u32 32, %s17
        %v173 = vld [vmem:[%s169] sm:$0xf]
        %v174 = vld [vmem:[%s169 + $0x4] sm:$0xf]
        %v175 = vld [vmem:[%s169 + $0x8] sm:$0xf]
        %v176 = vld [vmem:[%s169 + $0xc] sm:$0xf]
        %v177 = vld [vmem:[%s169 + $0x10] sm:$0xf]
        %v178 = vld [vmem:[%s169 + $0x14] sm:$0xf]
        %v179 = vld [vmem:[%s169 + $0x18] sm:$0xf]
        %v180 = vld [vmem:[%s169 + $0x1c] sm:$0xf]
        %v181 = vld [vmem:[%s169 + $0x20] sm:$0xf]
        %v182 = vld [vmem:[%s169 + $0x24] sm:$0xf]
        %v183 = vld [vmem:[%s169 + $0x28] sm:$0xf]
        %v184 = vld [vmem:[%s169 + $0x2c] sm:$0xf]
        %v185 = vld [vmem:[%s169 + $0x30] sm:$0xf]
        %v186 = vld [vmem:[%s169 + $0x34] sm:$0xf]
        %v187 = vld [vmem:[%s169 + $0x38] sm:$0xf]
        %v188 = vld [vmem:[%s169 + $0x3c] sm:$0xf]
        %v189 = vld [vmem:[%s169 + $0x40] sm:$0xf]
        %v190 = vld [vmem:[%s169 + $0x44] sm:$0xf]
        %v191 = vld [vmem:[%s169 + $0x48] sm:$0xf]
        %v192 = vld [vmem:[%s169 + $0x4c] sm:$0xf]
        %v193 = vld [vmem:[%s169 + $0x50] sm:$0xf]
        %v194 = vld [vmem:[%s169 + $0x54] sm:$0xf]
        %v195 = vld [vmem:[%s169 + $0x58] sm:$0xf]
        %v196 = vld [vmem:[%s169 + $0x5c] sm:$0xf]
        %v197 = vld [vmem:[%s169 + $0x60] sm:$0xf]
        %v198 = vld [vmem:[%s169 + $0x64] sm:$0xf]
        %v199 = vld [vmem:[%s169 + $0x68] sm:$0xf]
        %v200 = vld [vmem:[%s169 + $0x6c] sm:$0xf]
        %v201 = vld [vmem:[%s169 + $0x70] sm:$0xf]
        %v202 = vld [vmem:[%s169 + $0x74] sm:$0xf]
        %v203 = vld [vmem:[%s169 + $0x78] sm:$0xf]
        %v204 = vld [vmem:[%s169 + $0x7c] sm:$0xf]
        %v205 = vld [vmem:[%s1] sm:$0xf]
        %v206 = vld [vmem:[%s1 + $0x4] sm:$0xf]
        %v207 = vld [vmem:[%s1 + $0x8] sm:$0xf]
        %v208 = vld [vmem:[%s1 + $0xc] sm:$0xf]
        %v209 = vld [vmem:[%s1 + $0x10] sm:$0xf]
        %v210 = vld [vmem:[%s1 + $0x14] sm:$0xf]
        %v211 = vld [vmem:[%s1 + $0x18] sm:$0xf]
        %v212 = vld [vmem:[%s1 + $0x1c] sm:$0xf]
        %v213 = vld [vmem:[%s1 + $0x20] sm:$0xf]
        %v214 = vld [vmem:[%s1 + $0x24] sm:$0xf]
        %v215 = vld [vmem:[%s1 + $0x28] sm:$0xf]
        %v216 = vld [vmem:[%s1 + $0x2c] sm:$0xf]
        %v217 = vld [vmem:[%s2] sm:$0x1]
        %v219 = vlaneseq
        %v220 = vshrl.u32 %v219, 7
        %v221 = vsub.s32 0, %v220
        %v222 = vrot.slane %v217, %v221
        %v256 = vunpack.c.l.b16 %v173
        %v257 = vunpack.c.l.b16 %v174
        %v258 = vunpack.c.l.b16 %v175
        %v259 = vunpack.c.l.b16 %v176
        %v260 = vunpack.c.l.b16 %v177
        %v261 = vunpack.c.l.b16 %v178
        %v262 = vunpack.c.l.b16 %v179
        %v263 = vunpack.c.l.b16 %v180
        %v264 = vunpack.c.l.b16 %v181
        %v265 = vunpack.c.l.b16 %v182
        %v266 = vunpack.c.l.b16 %v183
        %v267 = vunpack.c.l.b16 %v184
        %v268 = vunpack.c.l.b16 %v185
        %v269 = vunpack.c.l.b16 %v186
        %v270 = vunpack.c.l.b16 %v187
        %v271 = vunpack.c.l.b16 %v188
        %v272 = vunpack.c.l.b16 %v189
        %v273 = vunpack.c.l.b16 %v190
        %v274 = vunpack.c.l.b16 %v191
        %v275 = vunpack.c.l.b16 %v192
        %v276 = vunpack.c.l.b16 %v193
        %v277 = vunpack.c.l.b16 %v194
        %v278 = vunpack.c.l.b16 %v195
        %v279 = vunpack.c.l.b16 %v196
        %v280 = vunpack.c.l.b16 %v197
        %v281 = vunpack.c.l.b16 %v198
        %v282 = vunpack.c.l.b16 %v199
        %v283 = vunpack.c.l.b16 %v200
        %v284 = vunpack.c.l.b16 %v201
        %v285 = vunpack.c.l.b16 %v202
        %v286 = vunpack.c.l.b16 %v203
        %v287 = vunpack.c.l.b16 %v204
        %v288 = vpack.c.b16 %v257, %v256
        %v289 = vpack.c.b16 %v259, %v258
        %v290 = vpack.c.b16 %v261, %v260
        %v291 = vpack.c.b16 %v263, %v262
        %v292 = vpack.c.b16 %v265, %v264
        %v293 = vpack.c.b16 %v267, %v266
        %v294 = vpack.c.b16 %v269, %v268
        %v295 = vpack.c.b16 %v271, %v270
        %v296 = vpack.c.b16 %v273, %v272
        %v297 = vpack.c.b16 %v275, %v274
        %v298 = vpack.c.b16 %v277, %v276
        %v299 = vpack.c.b16 %v279, %v278
        %v300 = vpack.c.b16 %v281, %v280
        %v301 = vpack.c.b16 %v283, %v282
        %v302 = vpack.c.b16 %v285, %v284
        %v303 = vpack.c.b16 %v287, %v286
        %v316 = vunpack.c.l.b16 %v205
        %v317 = vunpack.c.l.b16 %v206
        %v318 = vunpack.c.l.b16 %v207
        %v319 = vunpack.c.l.b16 %v208
        %v320 = vunpack.c.l.b16 %v209
        %v321 = vunpack.c.l.b16 %v210
        %v322 = vunpack.c.l.b16 %v211
        %v323 = vunpack.c.l.b16 %v212
        %v324 = vunpack.c.l.b16 %v213
        %v325 = vunpack.c.l.b16 %v214
        %v326 = vunpack.c.l.b16 %v215
        %v327 = vunpack.c.l.b16 %v216
        %v328 = vpack.c.b16 %v317, %v316
        %v329 = vpack.c.b16 %v319, %v318
        %v330 = vpack.c.b16 %v321, %v320
        %v331 = vpack.c.b16 %v323, %v322
        %v332 = vpack.c.b16 %v325, %v324
        %v333 = vpack.c.b16 %v327, %v326
        %vm340 = vcmask 785408
        %v342 = vsel %vm340, %v288, 0
        %v345 = vsel %vm340, %v289, 0
        %v348 = vsel %vm340, %v290, 0
        %v351 = vsel %vm340, %v291, 0
        %v354 = vsel %vm340, %v292, 0
        %v357 = vsel %vm340, %v293, 0
        %v360 = vsel %vm340, %v294, 0
        %v363 = vsel %vm340, %v295, 0
        %v366 = vsel %vm340, %v296, 0
        %v369 = vsel %vm340, %v297, 0
        %v372 = vsel %vm340, %v298, 0
        %v375 = vsel %vm340, %v299, 0
        %v378 = vsel %vm340, %v300, 0
        %v381 = vsel %vm340, %v301, 0
        %v384 = vsel %vm340, %v302, 0
        %v387 = vsel %vm340, %v303, 0
        %389 = vmatprep.subr.bf16.mxu0 0
        %390 = vmatpush1.bf16.msra.mxu0 0
        %391 = vmatprep.subr.bf16.mxu0 0
        %392 = vmatpush1.bf16.msra.mxu0 0
        %393 = vmatprep.subr.bf16.mxu0 0
        %394 = vmatpush1.bf16.msra.mxu0 %v333
        %395 = vmatprep.subr.bf16.mxu0 0
        %396 = vmatpush1.bf16.msra.mxu0 %v332
        %397 = vmatprep.subr.bf16.mxu0 0
        %398 = vmatpush1.bf16.msra.mxu0 %v331
        %399 = vmatprep.subr.bf16.mxu0 0
        %400 = vmatpush1.bf16.msra.mxu0 %v330
        %401 = vmatprep.subr.bf16.mxu0 0
        %402 = vmatpush1.bf16.msra.mxu0 %v329
        %403 = vmatprep.subr.bf16.mxu0 0
        %404 = vmatpush1.bf16.msra.mxu0 %v328
        %405 = vmatprep.subr.bf16.mxu0 0
        %406 = vmatpush2.bf16.msra.mxu0 0
        %407 = vmatprep.subr.bf16.mxu0 0
        %408 = vmatpush2.bf16.msra.mxu0 0
        %409 = vmatprep.subr.bf16.mxu0 0
        %410 = vmatpush2.bf16.msra.mxu0 0
        %411 = vmatprep.subr.bf16.mxu0 0
        %412 = vmatpush2.bf16.msra.mxu0 0
        %413 = vmatprep.subr.bf16.mxu0 0
        %414 = vmatpush2.bf16.msra.mxu0 0
        %415 = vmatprep.subr.bf16.mxu0 0
        %416 = vmatpush2.bf16.msra.mxu0 0
        %417 = vmatprep.subr.bf16.mxu0 0
        %418 = vmatpush2.bf16.msra.mxu0 0
        %419 = vmatprep.subr.bf16.mxu0 0
        %420 = vmatpush2.bf16.msra.mxu0 0
        %421 = vmatprep.mubr.bf16.mxu0 0
        %422 = vmatmul.mubr.bf16.gmra.mxu0 %v342
        %v423 = vpop.f32.mrf.mxu0
        %v424 = vadd.f32 %v222, %v423
        %v425 = vpop.f32.mrf.mxu0
        %v426 = vpop.f32.mrf.mxu0
        %v427 = vadd.f32 %v222, %v426
        %v428 = vpop.f32.mrf.mxu0
        %429 = vmatprep.mubr.bf16.mxu0 0
        %430 = vmatmul.mubr.bf16.gmra.mxu0 %v345
        %v431 = vpop.f32.mrf.mxu0
        %v432 = vadd.f32 %v222, %v431
        %v433 = vpop.f32.mrf.mxu0
        %v434 = vpop.f32.mrf.mxu0
        %v435 = vadd.f32 %v222, %v434
        %v436 = vpop.f32.mrf.mxu0
        %437 = vmatprep.mubr.bf16.mxu0 0
        %438 = vmatmul.mubr.bf16.gmra.mxu0 %v348
        %v439 = vpop.f32.mrf.mxu0
        %v440 = vadd.f32 %v222, %v439
        %v441 = vpop.f32.mrf.mxu0
        %v442 = vpop.f32.mrf.mxu0
        %v443 = vadd.f32 %v222, %v442
        %v444 = vpop.f32.mrf.mxu0
        %445 = vmatprep.mubr.bf16.mxu0 0
        %446 = vmatmul.mubr.bf16.gmra.mxu0 %v351
        %v447 = vpop.f32.mrf.mxu0
        %v448 = vadd.f32 %v222, %v447
        %v449 = vpop.f32.mrf.mxu0
        %v450 = vpop.f32.mrf.mxu0
        %v451 = vadd.f32 %v222, %v450
        %v452 = vpop.f32.mrf.mxu0
        %453 = vmatprep.mubr.bf16.mxu0 0
        %454 = vmatmul.mubr.bf16.gmra.mxu0 %v354
        %v455 = vpop.f32.mrf.mxu0
        %v456 = vadd.f32 %v222, %v455
        %v457 = vpop.f32.mrf.mxu0
        %v458 = vpop.f32.mrf.mxu0
        %v459 = vadd.f32 %v222, %v458
        %v460 = vpop.f32.mrf.mxu0
        %461 = vmatprep.mubr.bf16.mxu0 0
        %462 = vmatmul.mubr.bf16.gmra.mxu0 %v357
        %v463 = vpop.f32.mrf.mxu0
        %v464 = vadd.f32 %v222, %v463
        %v465 = vpop.f32.mrf.mxu0
        %v466 = vpop.f32.mrf.mxu0
        %v467 = vadd.f32 %v222, %v466
        %v468 = vpop.f32.mrf.mxu0
        %469 = vmatprep.mubr.bf16.mxu0 0
        %470 = vmatmul.mubr.bf16.gmra.mxu0 %v360
        %v471 = vpop.f32.mrf.mxu0
        %v472 = vadd.f32 %v222, %v471
        %v473 = vpop.f32.mrf.mxu0
        %v474 = vpop.f32.mrf.mxu0
        %v475 = vadd.f32 %v222, %v474
        %v476 = vpop.f32.mrf.mxu0
        %477 = vmatprep.mubr.bf16.mxu0 0
        %478 = vmatmul.mubr.bf16.gmra.mxu0 %v363
        %v479 = vpop.f32.mrf.mxu0
        %v480 = vadd.f32 %v222, %v479
        %v481 = vpop.f32.mrf.mxu0
        %v482 = vpop.f32.mrf.mxu0
        %v483 = vadd.f32 %v222, %v482
        %v484 = vpop.f32.mrf.mxu0
        %485 = vmatprep.mubr.bf16.mxu0 0
        %486 = vmatmul.mubr.bf16.gmra.mxu0 %v366
        %v487 = vpop.f32.mrf.mxu0
        %v488 = vadd.f32 %v222, %v487
        %v489 = vpop.f32.mrf.mxu0
        %v490 = vpop.f32.mrf.mxu0
        %v491 = vadd.f32 %v222, %v490
        %v492 = vpop.f32.mrf.mxu0
        %493 = vmatprep.mubr.bf16.mxu0 0
        %494 = vmatmul.mubr.bf16.gmra.mxu0 %v369
        %v495 = vpop.f32.mrf.mxu0
        %v496 = vadd.f32 %v222, %v495
        %v497 = vpop.f32.mrf.mxu0
        %v498 = vpop.f32.mrf.mxu0
        %v499 = vadd.f32 %v222, %v498
        %v500 = vpop.f32.mrf.mxu0
        %501 = vmatprep.mubr.bf16.mxu0 0
        %502 = vmatmul.mubr.bf16.gmra.mxu0 %v372
        %v503 = vpop.f32.mrf.mxu0
        %v504 = vadd.f32 %v222, %v503
        %v505 = vpop.f32.mrf.mxu0
        %v506 = vpop.f32.mrf.mxu0
        %v507 = vadd.f32 %v222, %v506
        %v508 = vpop.f32.mrf.mxu0
        %509 = vmatprep.mubr.bf16.mxu0 0
        %510 = vmatmul.mubr.bf16.gmra.mxu0 %v375
        %v511 = vpop.f32.mrf.mxu0
        %v512 = vadd.f32 %v222, %v511
        %v513 = vpop.f32.mrf.mxu0
        %v514 = vpop.f32.mrf.mxu0
        %v515 = vadd.f32 %v222, %v514
        %v516 = vpop.f32.mrf.mxu0
        %517 = vmatprep.mubr.bf16.mxu0 0
        %518 = vmatmul.mubr.bf16.gmra.mxu0 %v378
        %v519 = vpop.f32.mrf.mxu0
        %v520 = vadd.f32 %v222, %v519
        %v521 = vpop.f32.mrf.mxu0
        %v522 = vpop.f32.mrf.mxu0
        %v523 = vadd.f32 %v222, %v522
        %v524 = vpop.f32.mrf.mxu0
        %525 = vmatprep.mubr.bf16.mxu0 0
        %526 = vmatmul.mubr.bf16.gmra.mxu0 %v381
        %v527 = vpop.f32.mrf.mxu0
        %v528 = vadd.f32 %v222, %v527
        %v529 = vpop.f32.mrf.mxu0
        %v530 = vpop.f32.mrf.mxu0
        %v531 = vadd.f32 %v222, %v530
        %v532 = vpop.f32.mrf.mxu0
        %533 = vmatprep.mubr.bf16.mxu0 0
        %534 = vmatmul.mubr.bf16.gmra.mxu0 %v384
        %v535 = vpop.f32.mrf.mxu0
        %v536 = vadd.f32 %v222, %v535
        %v537 = vpop.f32.mrf.mxu0
        %v538 = vpop.f32.mrf.mxu0
        %v539 = vadd.f32 %v222, %v538
        %v540 = vpop.f32.mrf.mxu0
        %541 = vmatprep.mubr.bf16.mxu0 0
        %542 = vmatmul.mubr.bf16.gmra.mxu0 %v387
        %v543 = vpop.f32.mrf.mxu0
        %v544 = vadd.f32 %v222, %v543
        %v545 = vpop.f32.mrf.mxu0
        %v546 = vpop.f32.mrf.mxu0
        %v547 = vadd.f32 %v222, %v546
        %v548 = vpop.f32.mrf.mxu0
        %549 = vdwg.mxu0
        %v550 = vxor.u32 %v424, 2147483648
        %v551 = vxor.u32 %v427, 2147483648
        %v552 = vxor.u32 %v432, 2147483648
        %v553 = vxor.u32 %v435, 2147483648
        %v554 = vxor.u32 %v440, 2147483648
        %v555 = vxor.u32 %v443, 2147483648
        %v556 = vxor.u32 %v448, 2147483648
        %v557 = vxor.u32 %v451, 2147483648
        %v558 = vxor.u32 %v456, 2147483648
        %v559 = vxor.u32 %v459, 2147483648
        %v560 = vxor.u32 %v464, 2147483648
        %v561 = vxor.u32 %v467, 2147483648
        %v562 = vxor.u32 %v472, 2147483648
        %v563 = vxor.u32 %v475, 2147483648
        %v564 = vxor.u32 %v480, 2147483648
        %v565 = vxor.u32 %v483, 2147483648
        %v566 = vxor.u32 %v488, 2147483648
        %v567 = vxor.u32 %v491, 2147483648
        %v568 = vxor.u32 %v496, 2147483648
        %v569 = vxor.u32 %v499, 2147483648
        %v570 = vxor.u32 %v504, 2147483648
        %v571 = vxor.u32 %v507, 2147483648
        %v572 = vxor.u32 %v512, 2147483648
        %v573 = vxor.u32 %v515, 2147483648
        %v574 = vxor.u32 %v520, 2147483648
        %v575 = vxor.u32 %v523, 2147483648
        %v576 = vxor.u32 %v528, 2147483648
        %v577 = vxor.u32 %v531, 2147483648
        %v578 = vxor.u32 %v536, 2147483648
        %v579 = vxor.u32 %v539, 2147483648
        %v580 = vxor.u32 %v544, 2147483648
        %v581 = vxor.u32 %v547, 2147483648
        %v582 = vmul.f32 %v550, 1.442695
        %v583 = vpow.pop %v582
        %v584 = vmul.f32 %v551, 1.442695
        %v585 = vpow.pop %v584
        %v586 = vmul.f32 %v552, 1.442695
        %v587 = vpow.pop %v586
        %v588 = vmul.f32 %v553, 1.442695
        %v589 = vpow.pop %v588
        %v590 = vmul.f32 %v554, 1.442695
        %v591 = vpow.pop %v590
        %v592 = vmul.f32 %v555, 1.442695
        %v593 = vpow.pop %v592
        %v594 = vmul.f32 %v556, 1.442695
        %v595 = vpow.pop %v594
        %v596 = vmul.f32 %v557, 1.442695
        %v597 = vpow.pop %v596
        %v598 = vmul.f32 %v558, 1.442695
        %v599 = vpow.pop %v598
        %v600 = vmul.f32 %v559, 1.442695
        %v601 = vpow.pop %v600
        %v602 = vmul.f32 %v560, 1.442695
        %v603 = vpow.pop %v602
        %v604 = vmul.f32 %v561, 1.442695
        %v605 = vpow.pop %v604
        %v606 = vmul.f32 %v562, 1.442695
        %v607 = vpow.pop %v606
        %v608 = vmul.f32 %v563, 1.442695
        %v609 = vpow.pop %v608
        %v610 = vmul.f32 %v564, 1.442695
        %v611 = vpow.pop %v610
        %v612 = vmul.f32 %v565, 1.442695
        %v613 = vpow.pop %v612
        %v614 = vmul.f32 %v566, 1.442695
        %v615 = vpow.pop %v614
        %v616 = vmul.f32 %v567, 1.442695
        %v617 = vpow.pop %v616
        %v618 = vmul.f32 %v568, 1.442695
        %v619 = vpow.pop %v618
        %v620 = vmul.f32 %v569, 1.442695
        %v621 = vpow.pop %v620
        %v622 = vmul.f32 %v570, 1.442695
        %v623 = vpow.pop %v622
        %v624 = vmul.f32 %v571, 1.442695
        %v625 = vpow.pop %v624
        %v626 = vmul.f32 %v572, 1.442695
        %v627 = vpow.pop %v626
        %v628 = vmul.f32 %v573, 1.442695
        %v629 = vpow.pop %v628
        %v630 = vmul.f32 %v574, 1.442695
        %v631 = vpow.pop %v630
        %v632 = vmul.f32 %v575, 1.442695
        %v633 = vpow.pop %v632
        %v634 = vmul.f32 %v576, 1.442695
        %v635 = vpow.pop %v634
        %v636 = vmul.f32 %v577, 1.442695
        %v637 = vpow.pop %v636
        %v638 = vmul.f32 %v578, 1.442695
        %v639 = vpow.pop %v638
        %v640 = vmul.f32 %v579, 1.442695
        %v641 = vpow.pop %v640
        %v642 = vmul.f32 %v580, 1.442695
        %v643 = vpow.pop %v642
        %v644 = vmul.f32 %v581, 1.442695
        %v645 = vpow.pop %v644
        %v646 = vadd.f32 %v583, 1.0
        %v647 = vadd.f32 %v585, 1.0
        %v648 = vadd.f32 %v587, 1.0
        %v649 = vadd.f32 %v589, 1.0
        %v650 = vadd.f32 %v591, 1.0
        %v651 = vadd.f32 %v593, 1.0
        %v652 = vadd.f32 %v595, 1.0
        %v653 = vadd.f32 %v597, 1.0
        %v654 = vadd.f32 %v599, 1.0
        %v655 = vadd.f32 %v601, 1.0
        %v656 = vadd.f32 %v603, 1.0
        %v657 = vadd.f32 %v605, 1.0
        %v658 = vadd.f32 %v607, 1.0
        %v659 = vadd.f32 %v609, 1.0
        %v660 = vadd.f32 %v611, 1.0
        %v661 = vadd.f32 %v613, 1.0
        %v662 = vadd.f32 %v615, 1.0
        %v663 = vadd.f32 %v617, 1.0
        %v664 = vadd.f32 %v619, 1.0
        %v665 = vadd.f32 %v621, 1.0
        %v666 = vadd.f32 %v623, 1.0
        %v667 = vadd.f32 %v625, 1.0
        %v668 = vadd.f32 %v627, 1.0
        %v669 = vadd.f32 %v629, 1.0
        %v670 = vadd.f32 %v631, 1.0
        %v671 = vadd.f32 %v633, 1.0
        %v672 = vadd.f32 %v635, 1.0
        %v673 = vadd.f32 %v637, 1.0
        %v674 = vadd.f32 %v639, 1.0
        %v675 = vadd.f32 %v641, 1.0
        %v676 = vadd.f32 %v643, 1.0
        %v677 = vadd.f32 %v645, 1.0
        %v678 = vrcp.pop %v646
        %v679 = vmul.f32 1.0, %v678
        %v680 = vrcp.pop %v647
        %v681 = vmul.f32 1.0, %v680
        %v682 = vrcp.pop %v648
        %v683 = vmul.f32 1.0, %v682
        %v684 = vrcp.pop %v649
        %v685 = vmul.f32 1.0, %v684
        %v686 = vrcp.pop %v650
        %v687 = vmul.f32 1.0, %v686
        %v688 = vrcp.pop %v651
        %v689 = vmul.f32 1.0, %v688
        %v690 = vrcp.pop %v652
        %v691 = vmul.f32 1.0, %v690
        %v692 = vrcp.pop %v653
        %v693 = vmul.f32 1.0, %v692
        %v694 = vrcp.pop %v654
        %v695 = vmul.f32 1.0, %v694
        %v696 = vrcp.pop %v655
        %v697 = vmul.f32 1.0, %v696
        %v698 = vrcp.pop %v656
        %v699 = vmul.f32 1.0, %v698
        %v700 = vrcp.pop %v657
        %v701 = vmul.f32 1.0, %v700
        %v702 = vrcp.pop %v658
        %v703 = vmul.f32 1.0, %v702
        %v704 = vrcp.pop %v659
        %v705 = vmul.f32 1.0, %v704
        %v706 = vrcp.pop %v660
        %v707 = vmul.f32 1.0, %v706
        %v708 = vrcp.pop %v661
        %v709 = vmul.f32 1.0, %v708
        %v710 = vrcp.pop %v662
        %v711 = vmul.f32 1.0, %v710
        %v712 = vrcp.pop %v663
        %v713 = vmul.f32 1.0, %v712
        %v714 = vrcp.pop %v664
        %v715 = vmul.f32 1.0, %v714
        %v716 = vrcp.pop %v665
        %v717 = vmul.f32 1.0, %v716
        %v718 = vrcp.pop %v666
        %v719 = vmul.f32 1.0, %v718
        %v720 = vrcp.pop %v667
        %v721 = vmul.f32 1.0, %v720
        %v722 = vrcp.pop %v668
        %v723 = vmul.f32 1.0, %v722
        %v724 = vrcp.pop %v669
        %v725 = vmul.f32 1.0, %v724
        %v726 = vrcp.pop %v670
        %v727 = vmul.f32 1.0, %v726
        %v728 = vrcp.pop %v671
        %v729 = vmul.f32 1.0, %v728
        %v730 = vrcp.pop %v672
        %v731 = vmul.f32 1.0, %v730
        %v732 = vrcp.pop %v673
        %v733 = vmul.f32 1.0, %v732
        %v734 = vrcp.pop %v674
        %v735 = vmul.f32 1.0, %v734
        %v736 = vrcp.pop %v675
        %v737 = vmul.f32 1.0, %v736
        %v738 = vrcp.pop %v676
        %v739 = vmul.f32 1.0, %v738
        %v740 = vrcp.pop %v677
        %v741 = vmul.f32 1.0, %v740
        %v742 = vmul.f32 %v424, %v679
        %v743 = vmul.f32 %v427, %v681
        %v744 = vmul.f32 %v432, %v683
        %v745 = vmul.f32 %v435, %v685
        %v746 = vmul.f32 %v440, %v687
        %v747 = vmul.f32 %v443, %v689
        %v748 = vmul.f32 %v448, %v691
        %v749 = vmul.f32 %v451, %v693
        %v750 = vmul.f32 %v456, %v695
        %v751 = vmul.f32 %v459, %v697
        %v752 = vmul.f32 %v464, %v699
        %v753 = vmul.f32 %v467, %v701
        %v754 = vmul.f32 %v472, %v703
        %v755 = vmul.f32 %v475, %v705
        %v756 = vmul.f32 %v480, %v707
        %v757 = vmul.f32 %v483, %v709
        %v758 = vmul.f32 %v488, %v711
        %v759 = vmul.f32 %v491, %v713
        %v760 = vmul.f32 %v496, %v715
        %v761 = vmul.f32 %v499, %v717
        %v762 = vmul.f32 %v504, %v719
        %v763 = vmul.f32 %v507, %v721
        %v764 = vmul.f32 %v512, %v723
        %v765 = vmul.f32 %v515, %v725
        %v766 = vmul.f32 %v520, %v727
        %v767 = vmul.f32 %v523, %v729
        %v768 = vmul.f32 %v528, %v731
        %v769 = vmul.f32 %v531, %v733
        %v770 = vmul.f32 %v536, %v735
        %v771 = vmul.f32 %v539, %v737
        %v772 = vmul.f32 %v544, %v739
        %v773 = vmul.f32 %v547, %v741
        %v774 = vpack.c.bf16 %v743, %v742
        %v775 = vpack.c.bf16 %v745, %v744
        %v776 = vpack.c.bf16 %v747, %v746
        %v777 = vpack.c.bf16 %v749, %v748
        %v778 = vpack.c.bf16 %v751, %v750
        %v779 = vpack.c.bf16 %v753, %v752
        %v780 = vpack.c.bf16 %v755, %v754
        %v781 = vpack.c.bf16 %v757, %v756
        %v782 = vpack.c.bf16 %v759, %v758
        %v783 = vpack.c.bf16 %v761, %v760
        %v784 = vpack.c.bf16 %v763, %v762
        %v785 = vpack.c.bf16 %v765, %v764
        %v786 = vpack.c.bf16 %v767, %v766
        %v787 = vpack.c.bf16 %v769, %v768
        %v788 = vpack.c.bf16 %v771, %v770
        %v789 = vpack.c.bf16 %v773, %v772
        %v806 = vunpack.c.l.b16 %v774
        %v807 = vunpack.c.h.b16 %v774
        %v808 = vunpack.c.l.b16 %v775
        %v809 = vunpack.c.h.b16 %v775
        %v810 = vunpack.c.l.b16 %v776
        %v811 = vunpack.c.h.b16 %v776
        %v812 = vunpack.c.l.b16 %v777
        %v813 = vunpack.c.h.b16 %v777
        %v814 = vunpack.c.l.b16 %v778
        %v815 = vunpack.c.h.b16 %v778
        %v816 = vunpack.c.l.b16 %v779
        %v817 = vunpack.c.h.b16 %v779
        %v818 = vunpack.c.l.b16 %v780
        %v819 = vunpack.c.h.b16 %v780
        %v820 = vunpack.c.l.b16 %v781
        %v821 = vunpack.c.h.b16 %v781
        %v822 = vunpack.c.l.b16 %v782
        %v823 = vunpack.c.h.b16 %v782
        %v824 = vunpack.c.l.b16 %v783
        %v825 = vunpack.c.h.b16 %v783
        %v826 = vunpack.c.l.b16 %v784
        %v827 = vunpack.c.h.b16 %v784
        %v828 = vunpack.c.l.b16 %v785
        %v829 = vunpack.c.h.b16 %v785
        %v830 = vunpack.c.l.b16 %v786
        %v831 = vunpack.c.h.b16 %v786
        %v832 = vunpack.c.l.b16 %v787
        %v833 = vunpack.c.h.b16 %v787
        %v834 = vunpack.c.l.b16 %v788
        %v835 = vunpack.c.h.b16 %v788
        %v836 = vunpack.c.l.b16 %v789
        %v837 = vunpack.c.h.b16 %v789
        %v838 = vpack.c.b16 %v806, %v806
        %v839 = vpack.c.b16 %v807, %v807
        %v840 = vpack.c.b16 %v808, %v808
        %v841 = vpack.c.b16 %v809, %v809
        %v842 = vpack.c.b16 %v810, %v810
        %v843 = vpack.c.b16 %v811, %v811
        %v844 = vpack.c.b16 %v812, %v812
        %v845 = vpack.c.b16 %v813, %v813
        %v846 = vpack.c.b16 %v814, %v814
        %v847 = vpack.c.b16 %v815, %v815
        %v848 = vpack.c.b16 %v816, %v816
        %v849 = vpack.c.b16 %v817, %v817
        %v850 = vpack.c.b16 %v818, %v818
        %v851 = vpack.c.b16 %v819, %v819
        %v852 = vpack.c.b16 %v820, %v820
        %v853 = vpack.c.b16 %v821, %v821
        %v854 = vpack.c.b16 %v822, %v822
        %v855 = vpack.c.b16 %v823, %v823
        %v856 = vpack.c.b16 %v824, %v824
        %v857 = vpack.c.b16 %v825, %v825
        %v858 = vpack.c.b16 %v826, %v826
        %v859 = vpack.c.b16 %v827, %v827
        %v860 = vpack.c.b16 %v828, %v828
        %v861 = vpack.c.b16 %v829, %v829
        %v862 = vpack.c.b16 %v830, %v830
        %v863 = vpack.c.b16 %v831, %v831
        %v864 = vpack.c.b16 %v832, %v832
        %v865 = vpack.c.b16 %v833, %v833
        %v866 = vpack.c.b16 %v834, %v834
        %v867 = vpack.c.b16 %v835, %v835
        %v868 = vpack.c.b16 %v836, %v836
        %v869 = vpack.c.b16 %v837, %v837
        %902 = vst [vmem:[%s164] sm:$0xf] %v838
        %903 = vst [vmem:[%s164 + $0x4] sm:$0xf] %v839
        %904 = vst [vmem:[%s164 + $0x8] sm:$0xf] %v840
        %905 = vst [vmem:[%s164 + $0xc] sm:$0xf] %v841
        %906 = vst [vmem:[%s164 + $0x10] sm:$0xf] %v842
        %907 = vst [vmem:[%s164 + $0x14] sm:$0xf] %v843
        %908 = vst [vmem:[%s164 + $0x18] sm:$0xf] %v844
        %909 = vst [vmem:[%s164 + $0x1c] sm:$0xf] %v845
        %910 = vst [vmem:[%s164 + $0x20] sm:$0xf] %v846
        %911 = vst [vmem:[%s164 + $0x24] sm:$0xf] %v847
        %912 = vst [vmem:[%s164 + $0x28] sm:$0xf] %v848
        %913 = vst [vmem:[%s164 + $0x2c] sm:$0xf] %v849
        %914 = vst [vmem:[%s164 + $0x30] sm:$0xf] %v850
        %915 = vst [vmem:[%s164 + $0x34] sm:$0xf] %v851
        %916 = vst [vmem:[%s164 + $0x38] sm:$0xf] %v852
        %917 = vst [vmem:[%s164 + $0x3c] sm:$0xf] %v853
        %918 = vst [vmem:[%s164 + $0x40] sm:$0xf] %v854
        %919 = vst [vmem:[%s164 + $0x44] sm:$0xf] %v855
        %920 = vst [vmem:[%s164 + $0x48] sm:$0xf] %v856
        %921 = vst [vmem:[%s164 + $0x4c] sm:$0xf] %v857
        %922 = vst [vmem:[%s164 + $0x50] sm:$0xf] %v858
        %923 = vst [vmem:[%s164 + $0x54] sm:$0xf] %v859
        %924 = vst [vmem:[%s164 + $0x58] sm:$0xf] %v860
        %925 = vst [vmem:[%s164 + $0x5c] sm:$0xf] %v861
        %926 = vst [vmem:[%s164 + $0x60] sm:$0xf] %v862
        %927 = vst [vmem:[%s164 + $0x64] sm:$0xf] %v863
        %928 = vst [vmem:[%s164 + $0x68] sm:$0xf] %v864
        %929 = vst [vmem:[%s164 + $0x6c] sm:$0xf] %v865
        %930 = vst [vmem:[%s164 + $0x70] sm:$0xf] %v866
        %931 = vst [vmem:[%s164 + $0x74] sm:$0xf] %v867
        %932 = vst [vmem:[%s164 + $0x78] sm:$0xf] %v868
        %933 = vst [vmem:[%s164 + $0x7c] sm:$0xf] %v869
        %s934 = sand.u32 %s93, 1
        %s935 = scalar_lea.sflag [#allocation3], %s934
        %s936 = sand.u32 %s93, 1
        %s937 = smul.addr %s936, 128
        %s938 = scalar_lea.vmem [#allocation2], %s937
        // Predicated region
        $region33: #{tpu_custom_call.1} parent=31 // pred_check
          %p939 = pneg %p103
        $region34: #{tpu_custom_call.1} parent=31 // pred_check_branch
          %941 = sbr.rel (%p939) target = $region36
        $region35: #{tpu_custom_call.1} parent=31 // pred_region
          %s942 = smul.u32 32, %s17
          %s944 = ssub.s32 2048, 2048
          %945 = vsyncadd %s935, %s944
          %s946 = smul.addr %s942, 64
          %s947 = scalar_lea.hbm %s3, %s946
          %s948 = sshll.u32 %s938, 4
          %s949 = int_to_ptr.vmem [resolvable:$true] %s948
          %954 = dma.vmem_to_hbm [thread:$0]  %s949, 2048, %s947, %s935, 64, 64, 4
        $region36: #{tpu_custom_call.1} parent=31 // pred_fallthru
          _
      $region32: #{tpu_custom_call.1} parent=5 // pred_fallthru
        _
      %p955 = scmp.le.s32.totalorder 2, %s12
      // Predicated region
      $region37: #{tpu_custom_call.1} parent=5 // pred_check
        %p956 = pneg %p955
      $region38: #{tpu_custom_call.1} parent=5 // pred_check_branch
        %958 = sbr.rel (%p956) target = $region40
      $region39: #{tpu_custom_call.1} parent=5 // pred_region
        %s959 = ssub.s32 %s12, 2
        // Predicated region
        $region41: #{tpu_custom_call.1} parent=39 // pred_check
          %p960 = pneg %p109
        $region42: #{tpu_custom_call.1} parent=39 // pred_check_branch
          %962 = sbr.rel (%p960) target = $region44
        $region43: #{tpu_custom_call.1} parent=39 // pred_region
          %s963 = sand.u32 %s94, 1
          %s964 = scalar_lea.sflag [#allocation3], %s963
          %s965 = sand.u32 %s94, 1
          %s966 = smul.addr %s965, 128
          %s967 = scalar_lea.vmem [#allocation2], %s966
          %968 = dma.done %s964, 2048
        $region44: #{tpu_custom_call.1} parent=39 // pred_fallthru
          _
      $region40: #{tpu_custom_call.1} parent=5 // pred_fallthru
        _
    $region6: #{tpu_custom_call.1} parent=1 // loop_footer
      %s16 = sadd.s32 1, %s12
    $region7: #{tpu_custom_call.1} parent=1 // loop_footer_branch
      %11 = sbr.rel target = $region3
    $region8: #{tpu_custom_call.1} parent=1 // loop_exit
      _
    %969 = vsyncpa [#allocation3], 1
    %s970 = scalar_lea.sflag [#allocation3], 1
    %971 = vsyncpa %s970, 1

</llo_original>
